<compile_context>
chip_gen: v7x
topology: tpu7x:2x2x1
jax: 0.10.0
libtpu: 0.0.40
codegen_flags: <defaults>
</compile_context>

<pallas_src>
import math
import jax
import jax.numpy as jnp
from jax.experimental import pallas as pl
from jax.experimental.pallas import tpu as pltpu


# ----------------------------------------------------------------------------
# Helpers
# ----------------------------------------------------------------------------
def _cdiv(a, b):
    return -(-a // b)


def _round_up(x, m):
    return ((x + m - 1) // m) * m


def _pick_div_tile(dim, t_max):
    """Largest tile <= t_max dividing `dim`; prefer multiples of 256 (v6e/v7x
    MXU is 2x256x256), then 128.  Fallback: t_max (caller zero-pads)."""
    for mult in (256, 128):
        t = (t_max // mult) * mult
        while t >= mult:
            if dim % t == 0:
                return t
            t -= mult
    return t_max


# ----------------------------------------------------------------------------
# Kernels: Y = cast_bf16( X @ W (f32 acc) + b )
# ----------------------------------------------------------------------------
def _linear_kernel_1k(x_ref, w_ref, b_ref, o_ref):
    # Single K step: no f32 VMEM accumulator round trip.
    y = jnp.dot(x_ref[...], w_ref[...], preferred_element_type=jnp.float32)
    o_ref[...] = (y + b_ref[...].astype(jnp.float32)).astype(o_ref.dtype)


def _linear_kernel_nk(x_ref, w_ref, b_ref, o_ref, acc_ref):
    k = pl.program_id(2)

    @pl.when(k == 0)
    def _():
        acc_ref[...] = jnp.zeros_like(acc_ref)

    acc_ref[...] += jnp.dot(x_ref[...], w_ref[...],
                            preferred_element_type=jnp.float32)

    @pl.when(k == pl.num_programs(2) - 1)
    def _():
        o_ref[...] = (acc_ref[...] + b_ref[...].astype(jnp.float32)
                      ).astype(o_ref.dtype)


def _tiled_linear(x2, w, b, *, tm_cap=512, tn_max=1024, tk_max=1024,
                  vmem_budget=20 * 1024 * 1024):
    """x2: (M, K) bf16; w: (K, N) bf16; b: (1, N) bf16  ->  (M, N) bf16."""
    M, K = x2.shape
    K2, N = w.shape
    assert K == K2 and b.shape == (1, N)

    # ----- tn: full N when it fits (lane-dense, single j pass), else divisor.
    if N <= 2 * tn_max:
        tn = N
    else:
        tn = _pick_div_tile(N, tn_max)

    # ----- tk: full K when it fits (-> single-K fast path), else divisor.
    if K <= tk_max:
        tk, pad_k = K, 0
    else:
        tk = _pick_div_tile(K, tk_max)
        pad_k = (-K) % tk
    Kp = K + pad_k
    grid_k = Kp // tk
    grid_n = _cdiv(N, tn)

    # ----- tm from a VMEM byte budget (X/W/out double-buffered + f32 acc).
    per_row = 4 * tk + 4 * tn + (4 * tn if grid_k > 1 else 0)
    fixed = 2 * (tk * tn * 2) + 2 * (tn * 2)
    tm_budget = max(16, (vmem_budget - fixed) // max(per_row, 1))
    tm_budget = min(tm_budget, tm_cap)
    tm_budget = max(16, (tm_budget // 16) * 16)

    if M <= tm_budget:
        if grid_n == 1 and M > 32:
            # v7x megacore: keep >= 2 blocks along a "parallel" axis.
            tm = _round_up(_cdiv(M, 2), 16)
        else:
            tm = M                       # full-dim block (no padding needed)
    else:
        tm = tm_budget                   # 16-sublane aligned tile
    grid_m = _cdiv(M, tm)

    # Only K is ever explicitly padded (garbage in K blocks would corrupt real
    # outputs); uneven trailing M/N blocks are handled by masked stores.
    if pad_k:
        x2 = jnp.pad(x2, ((0, 0), (0, pad_k)))
        w = jnp.pad(w, ((0, pad_k), (0, 0)))

    cost = pl.CostEstimate(
        flops=2 * M * N * Kp,
        transcendentals=0,
        bytes_accessed=M * Kp * 2 + Kp * N * 2 + M * N * 2,
    )

    if grid_k == 1:
        grid = (grid_m, grid_n)
        in_specs = [
            pl.BlockSpec((tm, tk), lambda i, j: (i, 0)),
            pl.BlockSpec((tk, tn), lambda i, j: (0, j)),
            pl.BlockSpec((1, tn), lambda i, j: (0, j)),
        ]
        out_spec = pl.BlockSpec((tm, tn), lambda i, j: (i, j))
        scratch = ()
        kernel = _linear_kernel_1k
        dims = ("parallel", "parallel")
    else:
        grid = (grid_m, grid_n, grid_k)
        in_specs = [
            pl.BlockSpec((tm, tk), lambda i, j, k: (i, k)),
            pl.BlockSpec((tk, tn), lambda i, j, k: (k, j)),
            pl.BlockSpec((1, tn), lambda i, j, k: (0, j)),
        ]
        out_spec = pl.BlockSpec((tm, tn), lambda i, j, k: (i, j))
        scratch = [pltpu.VMEM((tm, tn), jnp.float32)]
        kernel = _linear_kernel_nk
        dims = ("parallel", "parallel", "arbitrary")

    return pl.pallas_call(
        kernel,
        out_shape=jax.ShapeDtypeStruct((M, N), x2.dtype),
        grid_spec=pltpu.PrefetchScalarGridSpec(
            num_scalar_prefetch=0,
            grid=grid,
            in_specs=in_specs,
            out_specs=out_spec,
            scratch_shapes=scratch,
        ),
        compiler_params=pltpu.CompilerParams(
            dimension_semantics=dims,
            vmem_limit_bytes=32 * 1024 * 1024,
        ),
        cost_estimate=cost,
    )(x2, w, b)


# ----------------------------------------------------------------------------
# Compressor module (JAX/Pallas)
# ----------------------------------------------------------------------------
class Compressor:
    def __init__(self, compr_rate, compr_linear_type, encoder_hidden_size,
                 decoder_hidden_size, vocab_size=128, key=None):
        assert compr_linear_type in ("concat", "mean")
        self.compr_rate = compr_rate
        self.compressing_mode = compr_linear_type
        self.encoder_hidden_size = encoder_hidden_size
        self.decoder_hidden_size = decoder_hidden_size

        if compr_linear_type == "concat":
            in_features = encoder_hidden_size * compr_rate
        else:  # 'mean' (torch 'cls'/'sep' share the same Linear shape)
            in_features = encoder_hidden_size

        key = jax.random.PRNGKey(0) if key is None else key
        kw, kb, ke = jax.random.split(key, 3)
        bound = 1.0 / math.sqrt(in_features)
        # torch.nn.Linear weight is (out, in); stored transposed as (in, out).
        self.W = jax.random.uniform(
            kw, (in_features, decoder_hidden_size), jnp.float32, -bound, bound
        ).astype(jnp.bfloat16)
        self.b = jax.random.uniform(
            kb, (1, decoder_hidden_size), jnp.float32, -bound, bound
        ).astype(jnp.bfloat16)

        # TODO(synk): the pretrained AutoModel encoder has no Pallas equivalent;
        # a deterministic embedding-table stand-in produces the "last hidden
        # state" (B, S, H) in bf16.
        self.emb = (0.02 * jax.random.normal(
            ke, (vocab_size, encoder_hidden_size), jnp.float32)).astype(jnp.bfloat16)

        self._forward_jit = jax.jit(self._forward_impl)

    def _encode(self, input_ids, attention_mask):
        # TODO(synk): the embedding gather + mask multiply could be fused into
        # the Pallas kernel via scalar-prefetch row gathering; under jit they
        # fuse with the per-segment mean / reshape feeding the pallas_call.
        h = jnp.take(self.emb, input_ids, axis=0)                 # (B, S, H) bf16
        return h * attention_mask[..., None].astype(h.dtype)

    def _forward_impl(self, input_ids, attention_mask):
        hidden = self._encode(input_ids, attention_mask)          # (B, S, H) bf16
        B, S, H = hidden.shape
        r = self.compr_rate
        num_embs = math.ceil(S / r)
        S_pad = num_embs * r
        if S_pad != S:
            # Zero-pad a trailing partial segment (the torch module itself
            # errors on this case; padded tokens dilute that segment's mean).
            hidden = jnp.pad(hidden, ((0, 0), (0, S_pad - S), (0, 0)))

        if self.compressing_mode == "concat":
            # per-segment flatten (token-major, hidden-minor) == flatten(start_dim=1)
            x = hidden.reshape(B * num_embs, r * H)               # (M, r*H)
        else:  # 'mean': pre-average each segment in f32, then one linear.
            # Mathematically identical to torch's linear-then-mean (linear
            # commutes with the mean; bias is per-row constant); only the bf16
            # rounding placement differs.
            x = hidden.reshape(B * num_embs, r, H)
            x = jnp.mean(x.astype(jnp.float32), axis=1).astype(hidden.dtype)

        y = _tiled_linear(x, self.W, self.b)                      # (M, N) bf16
        return y.reshape(B, num_embs, self.decoder_hidden_size)

    def forward(self, input_ids, attention_mask):
        return self._forward_jit(input_ids, attention_mask)


# ----------------------------------------------------------------------------
# main
# ----------------------------------------------------------------------------
if __name__ == "__main__":
    key = jax.random.PRNGKey(0)
    k_ids, k_mod = jax.random.split(key)

    B, S, H_enc, D_dec, R, VOCAB = 2, 16, 32, 128, 4, 128
    input_ids = jax.random.randint(k_ids, (B, S), 0, VOCAB, dtype=jnp.int32)
    attention_mask = jnp.ones((B, S), dtype=jnp.int32)

    # ---- concat mode ----
    comp_c = Compressor(R, "concat", H_enc, D_dec, vocab_size=VOCAB, key=k_mod)
    out_c = jax.block_until_ready(comp_c.forward(input_ids, attention_mask))
    assert out_c.shape == (B, S // R, D_dec) and out_c.dtype == jnp.bfloat16

    hid = comp_c._encode(input_ids, attention_mask)
    x_ref = hid.reshape(B * (S // R), R * H_enc)
    ref_c = (jnp.dot(x_ref, comp_c.W, preferred_element_type=jnp.float32)
             + comp_c.b.astype(jnp.float32)).astype(jnp.bfloat16)
    ref_c = ref_c.reshape(B, S // R, D_dec)
    assert jnp.allclose(out_c.astype(jnp.float32), ref_c.astype(jnp.float32),
                        rtol=2e-2, atol=2e-2)

    # ---- mean mode (torch-order reference: linear-then-mean) ----
    comp_m = Compressor(R, "mean", H_enc, D_dec, vocab_size=VOCAB, key=k_mod)
    out_m = jax.block_until_ready(comp_m.forward(input_ids, attention_mask))
    assert out_m.shape == (B, S // R, D_dec) and out_m.dtype == jnp.bfloat16

    hid_m = comp_m._encode(input_ids, attention_mask)
    xm = hid_m.reshape(B * (S // R), R, H_enc)
    lin = (jnp.einsum("mrh,hn->mrn", xm, comp_m.W,
                      preferred_element_type=jnp.float32)
           + comp_m.b.astype(jnp.float32)).astype(jnp.bfloat16)
    ref_m = jnp.mean(lin.astype(jnp.float32), axis=1).astype(jnp.bfloat16)
    ref_m = ref_m.reshape(B, S // R, D_dec)
    assert jnp.allclose(out_m.astype(jnp.float32), ref_m.astype(jnp.float32),
                        rtol=2e-2, atol=2e-2)

    # ---- multi-K accumulator path (direct kernel test, K split over 2 steps) ----
    kx, kw2, kb2 = jax.random.split(jax.random.PRNGKey(1), 3)
    Xt = jax.random.normal(kx, (24, 256), jnp.float32).astype(jnp.bfloat16)
    Wt = (0.05 * jax.random.normal(kw2, (256, 384), jnp.float32)).astype(jnp.bfloat16)
    bt = (0.05 * jax.random.normal(kb2, (1, 384), jnp.float32)).astype(jnp.bfloat16)
    yt = jax.block_until_ready(
        jax.jit(lambda a, b_, c: _tiled_linear(a, b_, c, tk_max=128))(Xt, Wt, bt))
    ref_t = (jnp.dot(Xt, Wt, preferred_element_type=jnp.float32)
             + bt.astype(jnp.float32)).astype(jnp.bfloat16)
    assert jnp.allclose(yt.astype(jnp.float32), ref_t.astype(jnp.float32),
                        rtol=2e-2, atol=2e-2)

    print("KERNEL_OK")
</pallas_src>

<mosaic_0001>
module attributes {stable_mosaic.version = 11 : i64} {
  func.func @_linear_kernel_1k(%arg0: i32, %arg1: i32, %arg2: memref<8x128xbf16, #tpu.memory_space<vmem>>, %arg3: memref<128x128xbf16, #tpu.memory_space<vmem>>, %arg4: memref<1x128xbf16, #tpu.memory_space<vmem>>, %arg5: memref<8x128xbf16, #tpu.memory_space<vmem>>) attributes {dimension_semantics = [#tpu.dimension_semantics<parallel>, #tpu.dimension_semantics<parallel>], iteration_bounds = array<i64: 1, 1>, scalar_prefetch = 0 : i64, scratch_operands = 0 : i64, tpu.core_type = #tpu.core_type<tc>, window_params = [{transform_indices = @transform_0, window_bounds = array<i64: 8, 128>}, {transform_indices = @transform_1, window_bounds = array<i64: 128, 128>}, {transform_indices = @transform_2, window_bounds = array<i64: 1, 128>}, {transform_indices = @transform_3, window_bounds = array<i64: 8, 128>}]} {
    %c0 = arith.constant 0 : index
    %c0_0 = arith.constant 0 : index
    %0 = vector.load %arg2[%c0, %c0_0] : memref<8x128xbf16, #tpu.memory_space<vmem>>, vector<8x128xbf16>
    %c0_1 = arith.constant 0 : index
    %c0_2 = arith.constant 0 : index
    %1 = vector.load %arg3[%c0_1, %c0_2] : memref<128x128xbf16, #tpu.memory_space<vmem>>, vector<128x128xbf16>
    %cst = arith.constant dense<0.000000e+00> : vector<8x128xf32>
    %2 = tpu.matmul %0, %1, %cst {dimension_numbers = #tpu.dot_dimension_numbers<[1], [0], [0], [1], [0, 0, 1, 1], [], []>} : vector<8x128xbf16>, vector<128x128xbf16>, vector<8x128xf32> -> vector<8x128xf32>
    %c0_3 = arith.constant 0 : index
    %c0_4 = arith.constant 0 : index
    %3 = vector.load %arg4[%c0_3, %c0_4] : memref<1x128xbf16, #tpu.memory_space<vmem>>, vector<1x128xbf16>
    %4 = arith.extf %3 : vector<1x128xbf16> to vector<1x128xf32>
    %5 = vector.broadcast %4 : vector<1x128xf32> to vector<8x128xf32>
    %6 = arith.addf %2, %5 : vector<8x128xf32>
    %7 = arith.truncf %6 : vector<8x128xf32> to vector<8x128xbf16>
    %c0_5 = arith.constant 0 : index
    %c0_6 = arith.constant 0 : index
    %8 = vector.load %arg5[%c0_5, %c0_6] : memref<8x128xbf16, #tpu.memory_space<vmem>>, vector<8x128xbf16>
    tpu.vector_store %arg5[%c0_5, %c0_6], %7 {strides = array<i32>} : memref<8x128xbf16, #tpu.memory_space<vmem>>, vector<8x128xbf16>,
    return
  }
  func.func @transform_0(%arg0: i32, %arg1: i32) -> (i32, i32) {
    %c0_i32 = arith.constant 0 : i32
    %c0_i32_0 = arith.constant 0 : i32
    return %arg0, %c0_i32 : i32, i32
  }
  func.func @transform_1(%arg0: i32, %arg1: i32) -> (i32, i32) {
    %c0_i32 = arith.constant 0 : i32
    %c0_i32_0 = arith.constant 0 : i32
    return %c0_i32, %arg1 : i32, i32
  }
  func.func @transform_2(%arg0: i32, %arg1: i32) -> (i32, i32) {
    %c0_i32 = arith.constant 0 : i32
    %c0_i32_0 = arith.constant 0 : i32
    return %c0_i32, %arg1 : i32, i32
  }
  func.func @transform_3(%arg0: i32, %arg1: i32) -> (i32, i32) {
    %c0_i32 = arith.constant 0 : i32
    return %arg0, %arg1 : i32, i32
  }
}

</mosaic_0001>

<llo_original>
// kernel: _forward_impl.1
$region0: #{_forward_impl.1}
  #allocation0 [shape = 'u32[]', space=smem, size = 0x4, offset = 0x4, fixed_abs, tag = 'smem constant byte address 0x4 - core index']
  #allocation1 [shape = 'u32[144,128]{1,0:T(1,128)}', space=vmem, size = 0x12000, scoped, tag = 'internal scratch']
  %s0 = inlined_call_operand.vmem [shape: bf16[8,128], index: 0, kind: input, shape index: {}]
  %s1 = inlined_call_operand.vmem [shape: bf16[128,128], index: 1, kind: input, shape index: {}]
  %s2 = inlined_call_operand.vmem [shape: bf16[1,128], index: 2, kind: input, shape index: {}]
  %s3 = inlined_call_operand.hbm [shape: bf16[8,128], index: 3, kind: output, shape index: {}]
  %s4 = sld [smem:[#allocation0]]
  $region22: #{_forward_impl.1} parent=0
    _
  %s6 = ssub.s32 1, %s4
  %s7 = scalar_select 0, %s6, %s4
  $region1: #{_forward_impl.1} parent=0
    #allocation2 [shape = 'u8[2048]{0}', space=vmem, size = 0x800, scoped, tag = 'output window, operand 0, single buffered']
    #allocation3 [shape = 's32[1]{0}', space=sflag, size = 0x4, scoped, tag = 'scoped memory for _forward_impl.1']
    %8 = vsyncpa [#allocation3], 0
    // Predicated region
    $region2: #{_forward_impl.1} parent=1 // pred_check
      _
    $region3: #{_forward_impl.1} parent=1 // pred_check_branch
      %10 = sbr.rel (0) target = $region5
    $region4: #{_forward_impl.1} parent=1 // pred_region
      _
    $region5: #{_forward_impl.1} parent=1 // pred_fallthru
      _
    // Predicated region
    $region6: #{_forward_impl.1} parent=1 // pred_check
      _
    $region7: #{_forward_impl.1} parent=1 // pred_check_branch
      %12 = sbr.rel (0) target = $region9
    $region8: #{_forward_impl.1} parent=1 // pred_region
      _
    $region9: #{_forward_impl.1} parent=1 // pred_fallthru
      _
    // Predicated region
    $region10: #{_forward_impl.1} parent=1 // pred_check
      _
    $region11: #{_forward_impl.1} parent=1 // pred_check_branch
      %14 = sbr.rel (0) target = $region13
    $region12: #{_forward_impl.1} parent=1 // pred_region
      _
    $region13: #{_forward_impl.1} parent=1 // pred_fallthru
      _
    %v16 = vld [vmem:[%s0] sm:$0xf]
    %v17 = vld [vmem:[%s1] sm:$0xf]
    %v18 = vld [vmem:[%s1 + $0x4] sm:$0xf]
    %v19 = vld [vmem:[%s1 + $0x8] sm:$0xf]
    %v20 = vld [vmem:[%s1 + $0xc] sm:$0xf]
    %v21 = vld [vmem:[%s1 + $0x10] sm:$0xf]
    %v22 = vld [vmem:[%s1 + $0x14] sm:$0xf]
    %v23 = vld [vmem:[%s1 + $0x18] sm:$0xf]
    %v24 = vld [vmem:[%s1 + $0x1c] sm:$0xf]
    %v25 = vld [vmem:[%s1 + $0x20] sm:$0xf]
    %v26 = vld [vmem:[%s1 + $0x24] sm:$0xf]
    %v27 = vld [vmem:[%s1 + $0x28] sm:$0xf]
    %v28 = vld [vmem:[%s1 + $0x2c] sm:$0xf]
    %v29 = vld [vmem:[%s1 + $0x30] sm:$0xf]
    %v30 = vld [vmem:[%s1 + $0x34] sm:$0xf]
    %v31 = vld [vmem:[%s1 + $0x38] sm:$0xf]
    %v32 = vld [vmem:[%s1 + $0x3c] sm:$0xf]
    %v33 = vld [vmem:[%s2] sm:$0x1]
    %v34 = vunpack.c.l.bf16 %v33
    %v35 = vlaneseq
    %v36 = vshrl.u32 %v35, 7
    %v37 = vsub.s32 0, %v36
    %v38 = vrot.slane %v34, %v37
    %v55 = vunpack.c.l.b16 %v17
    %v56 = vunpack.c.l.b16 %v18
    %v57 = vunpack.c.l.b16 %v19
    %v58 = vunpack.c.l.b16 %v20
    %v59 = vunpack.c.l.b16 %v21
    %v60 = vunpack.c.l.b16 %v22
    %v61 = vunpack.c.l.b16 %v23
    %v62 = vunpack.c.l.b16 %v24
    %v63 = vunpack.c.l.b16 %v25
    %v64 = vunpack.c.l.b16 %v26
    %v65 = vunpack.c.l.b16 %v27
    %v66 = vunpack.c.l.b16 %v28
    %v67 = vunpack.c.l.b16 %v29
    %v68 = vunpack.c.l.b16 %v30
    %v69 = vunpack.c.l.b16 %v31
    %v70 = vunpack.c.l.b16 %v32
    %v71 = vpack.c.b16 %v56, %v55
    %v72 = vpack.c.b16 %v58, %v57
    %v73 = vpack.c.b16 %v60, %v59
    %v74 = vpack.c.b16 %v62, %v61
    %v75 = vpack.c.b16 %v64, %v63
    %v76 = vpack.c.b16 %v66, %v65
    %v77 = vpack.c.b16 %v68, %v67
    %v78 = vpack.c.b16 %v70, %v69
    %87 = vmatprep.subr.bf16.mxu0 0
    %88 = vmatpush1.bf16.msra.mxu0 %v71
    %89 = vmatprep.subr.bf16.mxu0 0
    %90 = vmatpush1.bf16.msra.mxu0 %v72
    %91 = vmatprep.subr.bf16.mxu0 0
    %92 = vmatpush1.bf16.msra.mxu0 %v73
    %93 = vmatprep.subr.bf16.mxu0 0
    %94 = vmatpush1.bf16.msra.mxu0 %v74
    %95 = vmatprep.subr.bf16.mxu0 0
    %96 = vmatpush1.bf16.msra.mxu0 %v75
    %97 = vmatprep.subr.bf16.mxu0 0
    %98 = vmatpush1.bf16.msra.mxu0 %v76
    %99 = vmatprep.subr.bf16.mxu0 0
    %100 = vmatpush1.bf16.msra.mxu0 %v77
    %101 = vmatprep.subr.bf16.mxu0 0
    %102 = vmatpush1.bf16.msra.mxu0 %v78
    %103 = vmatprep.subr.bf16.mxu0 0
    %104 = vmatpush1.bf16.msra.mxu0 0
    %105 = vmatprep.subr.bf16.mxu0 0
    %106 = vmatpush1.bf16.msra.mxu0 0
    %107 = vmatprep.subr.bf16.mxu0 0
    %108 = vmatpush1.bf16.msra.mxu0 0
    %109 = vmatprep.subr.bf16.mxu0 0
    %110 = vmatpush1.bf16.msra.mxu0 0
    %111 = vmatprep.subr.bf16.mxu0 0
    %112 = vmatpush1.bf16.msra.mxu0 0
    %113 = vmatprep.subr.bf16.mxu0 0
    %114 = vmatpush1.bf16.msra.mxu0 0
    %115 = vmatprep.subr.bf16.mxu0 0
    %116 = vmatpush1.bf16.msra.mxu0 0
    %117 = vmatprep.subr.bf16.mxu0 0
    %118 = vmatpush1.bf16.msra.mxu0 0
    %119 = vmatprep.mubr.bf16.mxu0 0
    %120 = vmatmul.mubr.bf16.gmra.mrb[0].mxu0 %v16
    %v121 = vpop.f32.mrb[0].mxu0
    %v122 = vadd.f32 %v38, %v121
    %v123 = vpop.f32.mrb[0].mxu0
    %v124 = vpop.f32.mrb[0].mxu0
    %v125 = vpop.f32.mrb[0].mxu0
    %126 = vdwg.mxu0
    %v127 = vpack.c.bf16 %v122, %v122
    %128 = vst [vmem:[#allocation2] sm:$0xf] %v127
    // Predicated region
    $region14: #{_forward_impl.1} parent=1 // pred_check
      _
    $region15: #{_forward_impl.1} parent=1 // pred_check_branch
      %130 = sbr.rel (0) target = $region17
    $region16: #{_forward_impl.1} parent=1 // pred_region
      %s132 = ssub.s32 64, 64
      %133 = vsyncadd [#allocation3], %s132
      %s135 = sshll.u32 [#allocation2], 4
      %s136 = int_to_ptr.vmem [resolvable:$true] %s135
      %138 = dma.vmem_to_hbm [thread:$0]  %s136, 64, %s3, [#allocation3]
    $region17: #{_forward_impl.1} parent=1 // pred_fallthru
      _
    // Predicated region
    $region18: #{_forward_impl.1} parent=1 // pred_check
      _
    $region19: #{_forward_impl.1} parent=1 // pred_check_branch
      %140 = sbr.rel (0) target = $region21
    $region20: #{_forward_impl.1} parent=1 // pred_region
      %141 = dma.done [#allocation3], 64
    $region21: #{_forward_impl.1} parent=1 // pred_fallthru
      _
    %142 = vsyncpa [#allocation3], 1

</llo_original>
